<compile_context>
chip_gen: v5e
topology: v5e:2x2
jax: 0.10.0
libtpu: 0.0.40
codegen_flags: <defaults>
</compile_context>

<pallas_src>
import jax
import jax.numpy as jnp
import numpy as np
from jax import lax
from jax.experimental import pallas as pl
from jax.experimental.pallas import tpu as pltpu


def gnn_kernel(src_ref, adjt_ref, emb_ref, wf_ref, wd_ref, b_ref,
               out_ref, neg_ref, acc_ref):
    """
    src_ref : SMEM (1,)   int32  source node index.
    adjt_ref: VMEM (N, N) f32    adjacency TRANSPOSED: adjt[v, u] = adj[u, v].
    emb_ref : VMEM (N, F) f32    node_embedding(arange(N)).
    wf_ref  : VMEM (F, C) f32    fc.weight[:, :F].T   (feature part).
    wd_ref  : VMEM (N, C) f32    fc.weight[:, F:].T   (distance part).
    b_ref   : VMEM (1, C) f32    fc.bias.
    out_ref : VMEM (N, C) f32    logits.
    neg_ref : VMEM (1, 1) int32  has_negative_cycle flag.
    acc_ref : VMEM (N, C) f32    scratch: running D @ Wd^T accumulator.
    """
    N = adjt_ref.shape[0]
    adjt = adjt_ref[...]
    wd = wd_ref[...]
    src = src_ref[0]
    inf = jnp.float32(jnp.inf)

    node_col = lax.broadcasted_iota(jnp.int32, (N, 1), 0)   # node id, sublane oriented
    node_row = lax.broadcasted_iota(jnp.int32, (1, N), 1)   # node id, lane oriented
    eye = node_col == node_row                               # (N, N) loop-invariant mask

    # distances[:, 0] = +inf except distances[source, 0] = 0   (PyTorch reference layout)
    prev_row0 = jnp.where(node_row == src, jnp.float32(0.0), inf)   # (1, N)
    col0 = jnp.where(node_col == src, jnp.float32(0.0), inf)        # (N, 1)

    # Rank-1 accumulation of the distance part of the fc layer, seeded with column 0:
    #   acc[v, c] = sum_i distances[v, i] * Wd[i, c]
    acc_ref[...] = col0 * wd[0:1, :]

    def body(i, prev_row):
        # One relaxation -- a single (N, N) pass:
        #   new[v] = min_u (distances[u, i-1] + adj[u, v])
        new_col = jnp.min(adjt + prev_row, axis=1, keepdims=True)            # (N, 1)
        # Row i of Wd via an inf-free masked sublane reduce (no dynamic ref indexing).
        wd_row = jnp.sum(jnp.where(node_col == i, wd, 0.0),
                         axis=0, keepdims=True)                               # (1, C)
        # Fold column i of D straight into the logits (rank-1 update).
        acc_ref[...] += new_col * wd_row
        # Orientation flip (N,1) -> (1,N) for the next iteration's lane broadcast.
        # Masked cross-sublane reduce keeps +/-inf exact; avoids a narrow transpose.
        return jnp.sum(jnp.where(eye, new_col, 0.0), axis=0, keepdims=True)   # (1, N)

    unroll = True if N <= 64 else 2
    last_row = lax.fori_loop(1, N, body, prev_row0, unroll=unroll)   # D[:, N-1] as (1, N)

    # negative cycle <=> exists (u, v): D[u, N-1] + adj[u, v] < D[v, N-1]
    # evaluated in the transposed orientation (only adj^T is resident).
    last_col = jnp.sum(jnp.where(eye, last_row, 0.0), axis=1, keepdims=True)  # (N, 1)
    viol = jnp.where((adjt + last_row) < last_col, 1.0, 0.0)                  # (N, N) f32
    viol_col = jnp.max(viol, axis=1, keepdims=True)                           # (N, 1)
    neg_ref[...] = (jnp.max(viol_col, axis=0, keepdims=True) > 0.5).astype(jnp.int32)

    # fc(concat([embedding, distances], dim=1)) == emb @ Wf^T + D @ Wd^T + bias
    logits = jnp.dot(emb_ref[...], wf_ref[...], preferred_element_type=jnp.float32)
    out_ref[...] = logits + acc_ref[...] + b_ref[...]


def node_classification_gnn(adj_matrix, source_node, emb_weight, fc_weight, fc_bias):
    """adj_matrix (N,N) f32, source_node int, emb_weight (N,F) f32,
    fc_weight (C, F+N) f32, fc_bias (C,) f32 -> ((N,C) f32 logits, scalar bool)."""
    N, _ = adj_matrix.shape
    F = emb_weight.shape[1]
    C = fc_weight.shape[0]

    # Plain-JAX glue: split / pre-transpose the fc weight and transpose the adjacency once,
    # so the kernel needs only one (N,N) resident array and does plain in-kernel dots.
    wf_t = jnp.transpose(fc_weight[:, :F])          # (F, C)
    wd_t = jnp.transpose(fc_weight[:, F:])          # (N, C)
    b2 = fc_bias.reshape(1, C)
    adj_t = jnp.transpose(adj_matrix)               # adj_t[v, u] = adj[u, v]
    src = jnp.asarray([source_node], dtype=jnp.int32)

    # Generation-appropriate scoped-VMEM limit (v5e/v6e: 128 MiB physical, v7x: 64 MiB),
    # with headroom; conservative fallback if the query is unavailable.
    try:
        vmem_cap = pltpu.get_tpu_info().vmem_capacity_bytes
    except Exception:  # pragma: no cover
        vmem_cap = 64 * 1024 * 1024
    vmem_limit = min(int(vmem_cap * 0.85), 100 * 1024 * 1024)

    out, neg = pl.pallas_call(
        gnn_kernel,
        # No grid: single invocation, each operand resident once (nothing to pipeline,
        # hence no double buffering).
        in_specs=[
            pl.BlockSpec(memory_space=pltpu.MemorySpace.SMEM),   # source node (1,) int32
            pl.BlockSpec(memory_space=pltpu.MemorySpace.VMEM),   # adj^T        (N, N)
            pl.BlockSpec(memory_space=pltpu.MemorySpace.VMEM),   # embedding    (N, F)
            pl.BlockSpec(memory_space=pltpu.MemorySpace.VMEM),   # Wf^T         (F, C)
            pl.BlockSpec(memory_space=pltpu.MemorySpace.VMEM),   # Wd^T         (N, C)
            pl.BlockSpec(memory_space=pltpu.MemorySpace.VMEM),   # bias         (1, C)
        ],
        out_specs=(
            pl.BlockSpec(memory_space=pltpu.MemorySpace.VMEM),   # logits       (N, C)
            pl.BlockSpec(memory_space=pltpu.MemorySpace.VMEM),   # neg-cycle    (1, 1)
        ),
        out_shape=(
            jax.ShapeDtypeStruct((N, C), jnp.float32),
            jax.ShapeDtypeStruct((1, 1), jnp.int32),
        ),
        scratch_shapes=[pltpu.VMEM((N, C), jnp.float32)],
        compiler_params=pltpu.CompilerParams(vmem_limit_bytes=vmem_limit),
    )(src, adj_t, emb_weight, wf_t, wd_t, b2)

    return out, (neg[0, 0] != 0)


def _reference(adj, src, emb, fcw, fcb):
    """Pure-JAX reference of NodeClassificationGNN.forward (inf-exact distance part)."""
    N = adj.shape[0]
    F = emb.shape[1]
    inf = jnp.float32(jnp.inf)
    col = jnp.where(jnp.arange(N) == src, 0.0, inf).astype(jnp.float32)   # D[:, 0]
    cols = [col]
    for _ in range(1, N):
        col = jnp.min(col[:, None] + adj, axis=0)     # new[v] = min_u(prev[u] + adj[u, v])
        cols.append(col)
    D = jnp.stack(cols, axis=1)                                           # (N, N)
    last = D[:, N - 1]
    neg = jnp.any(last[:, None] + adj < last[None, :])
    Wf, Wd = fcw[:, :F], fcw[:, F:]
    dist_part = jnp.sum(D[:, :, None] * jnp.transpose(Wd)[None, :, :], axis=1)
    logits = jnp.dot(emb, jnp.transpose(Wf), precision=lax.Precision.HIGHEST)
    return logits + dist_part + fcb[None, :], neg


if __name__ == "__main__":
    num_nodes, num_features, num_classes = 8, 16, 4

    key = jax.random.PRNGKey(0)
    k1, k2, k3, k4 = jax.random.split(key, 4)

    # Deterministic synthetic inputs / parameters.
    adj_matrix = jnp.abs(jax.random.normal(k1, (num_nodes, num_nodes), jnp.float32)) + 0.1
    source_node = 0

    emb_weight = jax.random.normal(k2, (num_nodes, num_features), jnp.float32)  # nn.Embedding
    fan_in = num_features + num_nodes
    bound = 1.0 / (fan_in ** 0.5)
    fc_weight = jax.random.uniform(k3, (num_classes, fan_in), jnp.float32, -bound, bound)
    fc_bias = jax.random.uniform(k4, (num_classes,), jnp.float32, -bound, bound)

    logits, has_negative_cycle = node_classification_gnn(
        adj_matrix, source_node, emb_weight, fc_weight, fc_bias)
    jax.block_until_ready((logits, has_negative_cycle))

    assert logits.shape == (num_nodes, num_classes)
    assert has_negative_cycle.shape == ()

    # Correctness vs. a pure-JAX reference (generous tolerance; +/-inf rows, which the
    # PyTorch module also produces from D[:, 0], must match exactly by sign).
    ref_logits, ref_neg = _reference(adj_matrix, source_node, emb_weight, fc_weight, fc_bias)
    np.testing.assert_allclose(np.asarray(logits), np.asarray(ref_logits),
                               rtol=5e-2, atol=5e-2)
    assert bool(has_negative_cycle) == bool(ref_neg)

    print("KERNEL_OK")
</pallas_src>

<mosaic_0001>
module attributes {stable_mosaic.version = 11 : i64} {
  func.func @gnn_kernel(%arg0: memref<1xi32, #tpu.memory_space<smem>>, %arg1: memref<8x8xf32, #tpu.memory_space<vmem>>, %arg2: memref<8x16xf32, #tpu.memory_space<vmem>>, %arg3: memref<16x4xf32, #tpu.memory_space<vmem>>, %arg4: memref<8x4xf32, #tpu.memory_space<vmem>>, %arg5: memref<1x4xf32, #tpu.memory_space<vmem>>, %arg6: memref<8x4xf32, #tpu.memory_space<vmem>>, %arg7: memref<1x1xi32, #tpu.memory_space<vmem>>, %arg8: memref<8x4xf32, #tpu.memory_space<vmem>>) attributes {dimension_semantics = [], scalar_prefetch = 0 : i64, scratch_operands = 1 : i64, tpu.core_type = #tpu.core_type<tc>} {
    %c0 = arith.constant 0 : index
    %c0_0 = arith.constant 0 : index
    %0 = vector.load %arg1[%c0, %c0_0] : memref<8x8xf32, #tpu.memory_space<vmem>>, vector<8x8xf32>
    %c0_1 = arith.constant 0 : index
    %c0_2 = arith.constant 0 : index
    %1 = vector.load %arg4[%c0_1, %c0_2] : memref<8x4xf32, #tpu.memory_space<vmem>>, vector<8x4xf32>
    %c0_3 = arith.constant 0 : index
    %2 = memref.load %arg0[%c0_3] : memref<1xi32, #tpu.memory_space<smem>>
    %3 = tpu.iota {dimensions = array<i32: 0>} : vector<8x1xi32>
    %4 = tpu.iota {dimensions = array<i32: 1>} : vector<1x8xi32>
    %5 = vector.broadcast %3 : vector<8x1xi32> to vector<8x8xi32>
    %6 = vector.broadcast %4 : vector<1x8xi32> to vector<8x8xi32>
    %7 = arith.cmpi eq, %5, %6 : vector<8x8xi32>
    %8 = vector.broadcast %2 : i32 to vector<1x8xi32>
    %9 = arith.cmpi eq, %4, %8 : vector<1x8xi32>
    %cst = arith.constant 0.000000e+00 : f32
    %cst_4 = arith.constant 0x7F800000 : f32
    %10 = vector.broadcast %cst : f32 to vector<1x8xf32>
    %11 = vector.broadcast %cst_4 : f32 to vector<1x8xf32>
    %12 = arith.select %9, %10, %11 : vector<1x8xi1>, vector<1x8xf32>
    %13 = vector.broadcast %2 : i32 to vector<8x1xi32>
    %14 = arith.cmpi eq, %3, %13 : vector<8x1xi32>
    %cst_5 = arith.constant 0.000000e+00 : f32
    %cst_6 = arith.constant 0x7F800000 : f32
    %15 = vector.broadcast %cst_5 : f32 to vector<8x1xf32>
    %16 = vector.broadcast %cst_6 : f32 to vector<8x1xf32>
    %17 = arith.select %14, %15, %16 : vector<8x1xi1>, vector<8x1xf32>
    %18 = vector.extract_strided_slice %1 {offsets = [0, 0], sizes = [1, 4], strides = [1, 1]} : vector<8x4xf32> to vector<1x4xf32>
    %19 = vector.broadcast %17 : vector<8x1xf32> to vector<8x4xf32>
    %20 = vector.broadcast %18 : vector<1x4xf32> to vector<8x4xf32>
    %21 = arith.mulf %19, %20 : vector<8x4xf32>
    %c0_7 = arith.constant 0 : index
    %c0_8 = arith.constant 0 : index
    %22 = vector.load %arg8[%c0_7, %c0_8] : memref<8x4xf32, #tpu.memory_space<vmem>>, vector<8x4xf32>
    tpu.vector_store %arg8[%c0_7, %c0_8], %21 {strides = array<i32>} : memref<8x4xf32, #tpu.memory_space<vmem>>, vector<8x4xf32>,
    %c1_i32 = arith.constant 1 : i32
    %23 = vector.broadcast %12 : vector<1x8xf32> to vector<8x8xf32>
    %24 = arith.addf %0, %23 : vector<8x8xf32>
    %cst_9 = arith.constant dense<0x7F800000> : vector<8xf32>
    %25 = vector.multi_reduction <minimumf>, %24, %cst_9 [1] : vector<8x8xf32> to vector<8xf32>
    %26 = vector.shape_cast %25 : vector<8xf32> to vector<8x1xf32>
    %27 = vector.broadcast %c1_i32 : i32 to vector<8x1xi32>
    %28 = arith.cmpi eq, %3, %27 : vector<8x1xi32>
    %cst_10 = arith.constant 0.000000e+00 : f32
    %29 = vector.shape_cast %28 : vector<8x1xi1> to vector<8x1xi1>
    %30 = vector.broadcast %29 : vector<8x1xi1> to vector<8x4xi1>
    %31 = vector.broadcast %cst_10 : f32 to vector<8x4xf32>
    %32 = arith.select %30, %1, %31 : vector<8x4xi1>, vector<8x4xf32>
    %cst_11 = arith.constant dense<0.000000e+00> : vector<4xf32>
    %33 = vector.multi_reduction <add>, %32, %cst_11 [0] : vector<8x4xf32> to vector<4xf32>
    %34 = vector.shape_cast %33 : vector<4xf32> to vector<1x4xf32>
    %c0_12 = arith.constant 0 : index
    %c0_13 = arith.constant 0 : index
    %35 = vector.load %arg8[%c0_12, %c0_13] : memref<8x4xf32, #tpu.memory_space<vmem>>, vector<8x4xf32>
    %36 = vector.broadcast %26 : vector<8x1xf32> to vector<8x4xf32>
    %37 = vector.broadcast %34 : vector<1x4xf32> to vector<8x4xf32>
    %38 = arith.mulf %36, %37 : vector<8x4xf32>
    %39 = arith.addf %35, %38 : vector<8x4xf32>
    %c0_14 = arith.constant 0 : index
    %c0_15 = arith.constant 0 : index
    %40 = vector.load %arg8[%c0_14, %c0_15] : memref<8x4xf32, #tpu.memory_space<vmem>>, vector<8x4xf32>
    tpu.vector_store %arg8[%c0_14, %c0_15], %39 {strides = array<i32>} : memref<8x4xf32, #tpu.memory_space<vmem>>, vector<8x4xf32>,
    %cst_16 = arith.constant 0.000000e+00 : f32
    %41 = vector.shape_cast %26 : vector<8x1xf32> to vector<8x1xf32>
    %42 = vector.broadcast %41 : vector<8x1xf32> to vector<8x8xf32>
    %43 = vector.broadcast %cst_16 : f32 to vector<8x8xf32>
    %44 = arith.select %7, %42, %43 : vector<8x8xi1>, vector<8x8xf32>
    %cst_17 = arith.constant dense<0.000000e+00> : vector<8xf32>
    %45 = vector.multi_reduction <add>, %44, %cst_17 [0] : vector<8x8xf32> to vector<8xf32>
    %46 = vector.shape_cast %45 : vector<8xf32> to vector<1x8xf32>
    %c2_i32 = arith.constant 2 : i32
    %47 = vector.broadcast %46 : vector<1x8xf32> to vector<8x8xf32>
    %48 = arith.addf %0, %47 : vector<8x8xf32>
    %cst_18 = arith.constant dense<0x7F800000> : vector<8xf32>
    %49 = vector.multi_reduction <minimumf>, %48, %cst_18 [1] : vector<8x8xf32> to vector<8xf32>
    %50 = vector.shape_cast %49 : vector<8xf32> to vector<8x1xf32>
    %51 = vector.broadcast %c2_i32 : i32 to vector<8x1xi32>
    %52 = arith.cmpi eq, %3, %51 : vector<8x1xi32>
    %cst_19 = arith.constant 0.000000e+00 : f32
    %53 = vector.shape_cast %52 : vector<8x1xi1> to vector<8x1xi1>
    %54 = vector.broadcast %53 : vector<8x1xi1> to vector<8x4xi1>
    %55 = vector.broadcast %cst_19 : f32 to vector<8x4xf32>
    %56 = arith.select %54, %1, %55 : vector<8x4xi1>, vector<8x4xf32>
    %cst_20 = arith.constant dense<0.000000e+00> : vector<4xf32>
    %57 = vector.multi_reduction <add>, %56, %cst_20 [0] : vector<8x4xf32> to vector<4xf32>
    %58 = vector.shape_cast %57 : vector<4xf32> to vector<1x4xf32>
    %c0_21 = arith.constant 0 : index
    %c0_22 = arith.constant 0 : index
    %59 = vector.load %arg8[%c0_21, %c0_22] : memref<8x4xf32, #tpu.memory_space<vmem>>, vector<8x4xf32>
    %60 = vector.broadcast %50 : vector<8x1xf32> to vector<8x4xf32>
    %61 = vector.broadcast %58 : vector<1x4xf32> to vector<8x4xf32>
    %62 = arith.mulf %60, %61 : vector<8x4xf32>
    %63 = arith.addf %59, %62 : vector<8x4xf32>
    %c0_23 = arith.constant 0 : index
    %c0_24 = arith.constant 0 : index
    %64 = vector.load %arg8[%c0_23, %c0_24] : memref<8x4xf32, #tpu.memory_space<vmem>>, vector<8x4xf32>
    tpu.vector_store %arg8[%c0_23, %c0_24], %63 {strides = array<i32>} : memref<8x4xf32, #tpu.memory_space<vmem>>, vector<8x4xf32>,
    %cst_25 = arith.constant 0.000000e+00 : f32
    %65 = vector.shape_cast %50 : vector<8x1xf32> to vector<8x1xf32>
    %66 = vector.broadcast %65 : vector<8x1xf32> to vector<8x8xf32>
    %67 = vector.broadcast %cst_25 : f32 to vector<8x8xf32>
    %68 = arith.select %7, %66, %67 : vector<8x8xi1>, vector<8x8xf32>
    %cst_26 = arith.constant dense<0.000000e+00> : vector<8xf32>
    %69 = vector.multi_reduction <add>, %68, %cst_26 [0] : vector<8x8xf32> to vector<8xf32>
    %70 = vector.shape_cast %69 : vector<8xf32> to vector<1x8xf32>
    %c3_i32 = arith.constant 3 : i32
    %71 = vector.broadcast %70 : vector<1x8xf32> to vector<8x8xf32>
    %72 = arith.addf %0, %71 : vector<8x8xf32>
    %cst_27 = arith.constant dense<0x7F800000> : vector<8xf32>
    %73 = vector.multi_reduction <minimumf>, %72, %cst_27 [1] : vector<8x8xf32> to vector<8xf32>
    %74 = vector.shape_cast %73 : vector<8xf32> to vector<8x1xf32>
    %75 = vector.broadcast %c3_i32 : i32 to vector<8x1xi32>
    %76 = arith.cmpi eq, %3, %75 : vector<8x1xi32>
    %cst_28 = arith.constant 0.000000e+00 : f32
    %77 = vector.shape_cast %76 : vector<8x1xi1> to vector<8x1xi1>
    %78 = vector.broadcast %77 : vector<8x1xi1> to vector<8x4xi1>
    %79 = vector.broadcast %cst_28 : f32 to vector<8x4xf32>
    %80 = arith.select %78, %1, %79 : vector<8x4xi1>, vector<8x4xf32>
    %cst_29 = arith.constant dense<0.000000e+00> : vector<4xf32>
    %81 = vector.multi_reduction <add>, %80, %cst_29 [0] : vector<8x4xf32> to vector<4xf32>
    %82 = vector.shape_cast %81 : vector<4xf32> to vector<1x4xf32>
    %c0_30 = arith.constant 0 : index
    %c0_31 = arith.constant 0 : index
    %83 = vector.load %arg8[%c0_30, %c0_31] : memref<8x4xf32, #tpu.memory_space<vmem>>, vector<8x4xf32>
    %84 = vector.broadcast %74 : vector<8x1xf32> to vector<8x4xf32>
    %85 = vector.broadcast %82 : vector<1x4xf32> to vector<8x4xf32>
    %86 = arith.mulf %84, %85 : vector<8x4xf32>
    %87 = arith.addf %83, %86 : vector<8x4xf32>
    %c0_32 = arith.constant 0 : index
    %c0_33 = arith.constant 0 : index
    %88 = vector.load %arg8[%c0_32, %c0_33] : memref<8x4xf32, #tpu.memory_space<vmem>>, vector<8x4xf32>
    tpu.vector_store %arg8[%c0_32, %c0_33], %87 {strides = array<i32>} : memref<8x4xf32, #tpu.memory_space<vmem>>, vector<8x4xf32>,
    %cst_34 = arith.constant 0.000000e+00 : f32
    %89 = vector.shape_cast %74 : vector<8x1xf32> to vector<8x1xf32>
    %90 = vector.broadcast %89 : vector<8x1xf32> to vector<8x8xf32>
    %91 = vector.broadcast %cst_34 : f32 to vector<8x8xf32>
    %92 = arith.select %7, %90, %91 : vector<8x8xi1>, vector<8x8xf32>
    %cst_35 = arith.constant dense<0.000000e+00> : vector<8xf32>
    %93 = vector.multi_reduction <add>, %92, %cst_35 [0] : vector<8x8xf32> to vector<8xf32>
    %94 = vector.shape_cast %93 : vector<8xf32> to vector<1x8xf32>
    %c4_i32 = arith.constant 4 : i32
    %95 = vector.broadcast %94 : vector<1x8xf32> to vector<8x8xf32>
    %96 = arith.addf %0, %95 : vector<8x8xf32>
    %cst_36 = arith.constant dense<0x7F800000> : vector<8xf32>
    %97 = vector.multi_reduction <minimumf>, %96, %cst_36 [1] : vector<8x8xf32> to vector<8xf32>
    %98 = vector.shape_cast %97 : vector<8xf32> to vector<8x1xf32>
    %99 = vector.broadcast %c4_i32 : i32 to vector<8x1xi32>
    %100 = arith.cmpi eq, %3, %99 : vector<8x1xi32>
    %cst_37 = arith.constant 0.000000e+00 : f32
    %101 = vector.shape_cast %100 : vector<8x1xi1> to vector<8x1xi1>
    %102 = vector.broadcast %101 : vector<8x1xi1> to vector<8x4xi1>
    %103 = vector.broadcast %cst_37 : f32 to vector<8x4xf32>
    %104 = arith.select %102, %1, %103 : vector<8x4xi1>, vector<8x4xf32>
    %cst_38 = arith.constant dense<0.000000e+00> : vector<4xf32>
    %105 = vector.multi_reduction <add>, %104, %cst_38 [0] : vector<8x4xf32> to vector<4xf32>
    %106 = vector.shape_cast %105 : vector<4xf32> to vector<1x4xf32>
    %c0_39 = arith.constant 0 : index
    %c0_40 = arith.constant 0 : index
    %107 = vector.load %arg8[%c0_39, %c0_40] : memref<8x4xf32, #tpu.memory_space<vmem>>, vector<8x4xf32>
    %108 = vector.broadcast %98 : vector<8x1xf32> to vector<8x4xf32>
    %109 = vector.broadcast %106 : vector<1x4xf32> to vector<8x4xf32>
    %110 = arith.mulf %108, %109 : vector<8x4xf32>
    %111 = arith.addf %107, %110 : vector<8x4xf32>
    %c0_41 = arith.constant 0 : index
    %c0_42 = arith.constant 0 : index
    %112 = vector.load %arg8[%c0_41, %c0_42] : memref<8x4xf32, #tpu.memory_space<vmem>>, vector<8x4xf32>
    tpu.vector_store %arg8[%c0_41, %c0_42], %111 {strides = array<i32>} : memref<8x4xf32, #tpu.memory_space<vmem>>, vector<8x4xf32>,
    %cst_43 = arith.constant 0.000000e+00 : f32
    %113 = vector.shape_cast %98 : vector<8x1xf32> to vector<8x1xf32>
    %114 = vector.broadcast %113 : vector<8x1xf32> to vector<8x8xf32>
    %115 = vector.broadcast %cst_43 : f32 to vector<8x8xf32>
    %116 = arith.select %7, %114, %115 : vector<8x8xi1>, vector<8x8xf32>
    %cst_44 = arith.constant dense<0.000000e+00> : vector<8xf32>
    %117 = vector.multi_reduction <add>, %116, %cst_44 [0] : vector<8x8xf32> to vector<8xf32>
    %118 = vector.shape_cast %117 : vector<8xf32> to vector<1x8xf32>
    %c5_i32 = arith.constant 5 : i32
    %119 = vector.broadcast %118 : vector<1x8xf32> to vector<8x8xf32>
    %120 = arith.addf %0, %119 : vector<8x8xf32>
    %cst_45 = arith.constant dense<0x7F800000> : vector<8xf32>
    %121 = vector.multi_reduction <minimumf>, %120, %cst_45 [1] : vector<8x8xf32> to vector<8xf32>
    %122 = vector.shape_cast %121 : vector<8xf32> to vector<8x1xf32>
    %123 = vector.broadcast %c5_i32 : i32 to vector<8x1xi32>
    %124 = arith.cmpi eq, %3, %123 : vector<8x1xi32>
    %cst_46 = arith.constant 0.000000e+00 : f32
    %125 = vector.shape_cast %124 : vector<8x1xi1> to vector<8x1xi1>
    %126 = vector.broadcast %125 : vector<8x1xi1> to vector<8x4xi1>
    %127 = vector.broadcast %cst_46 : f32 to vector<8x4xf32>
    %128 = arith.select %126, %1, %127 : vector<8x4xi1>, vector<8x4xf32>
    %cst_47 = arith.constant dense<0.000000e+00> : vector<4xf32>
    %129 = vector.multi_reduction <add>, %128, %cst_47 [0] : vector<8x4xf32> to vector<4xf32>
    %130 = vector.shape_cast %129 : vector<4xf32> to vector<1x4xf32>
    %c0_48 = arith.constant 0 : index
    %c0_49 = arith.constant 0 : index
    %131 = vector.load %arg8[%c0_48, %c0_49] : memref<8x4xf32, #tpu.memory_space<vmem>>, vector<8x4xf32>
    %132 = vector.broadcast %122 : vector<8x1xf32> to vector<8x4xf32>
    %133 = vector.broadcast %130 : vector<1x4xf32> to vector<8x4xf32>
    %134 = arith.mulf %132, %133 : vector<8x4xf32>
    %135 = arith.addf %131, %134 : vector<8x4xf32>
    %c0_50 = arith.constant 0 : index
    %c0_51 = arith.constant 0 : index
    %136 = vector.load %arg8[%c0_50, %c0_51] : memref<8x4xf32, #tpu.memory_space<vmem>>, vector<8x4xf32>
    tpu.vector_store %arg8[%c0_50, %c0_51], %135 {strides = array<i32>} : memref<8x4xf32, #tpu.memory_space<vmem>>, vector<8x4xf32>,
    %cst_52 = arith.constant 0.000000e+00 : f32
    %137 = vector.shape_cast %122 : vector<8x1xf32> to vector<8x1xf32>
    %138 = vector.broadcast %137 : vector<8x1xf32> to vector<8x8xf32>
    %139 = vector.broadcast %cst_52 : f32 to vector<8x8xf32>
    %140 = arith.select %7, %138, %139 : vector<8x8xi1>, vector<8x8xf32>
    %cst_53 = arith.constant dense<0.000000e+00> : vector<8xf32>
    %141 = vector.multi_reduction <add>, %140, %cst_53 [0] : vector<8x8xf32> to vector<8xf32>
    %142 = vector.shape_cast %141 : vector<8xf32> to vector<1x8xf32>
    %c6_i32 = arith.constant 6 : i32
    %143 = vector.broadcast %142 : vector<1x8xf32> to vector<8x8xf32>
    %144 = arith.addf %0, %143 : vector<8x8xf32>
    %cst_54 = arith.constant dense<0x7F800000> : vector<8xf32>
    %145 = vector.multi_reduction <minimumf>, %144, %cst_54 [1] : vector<8x8xf32> to vector<8xf32>
    %146 = vector.shape_cast %145 : vector<8xf32> to vector<8x1xf32>
    %147 = vector.broadcast %c6_i32 : i32 to vector<8x1xi32>
    %148 = arith.cmpi eq, %3, %147 : vector<8x1xi32>
    %cst_55 = arith.constant 0.000000e+00 : f32
    %149 = vector.shape_cast %148 : vector<8x1xi1> to vector<8x1xi1>
    %150 = vector.broadcast %149 : vector<8x1xi1> to vector<8x4xi1>
    %151 = vector.broadcast %cst_55 : f32 to vector<8x4xf32>
    %152 = arith.select %150, %1, %151 : vector<8x4xi1>, vector<8x4xf32>
    %cst_56 = arith.constant dense<0.000000e+00> : vector<4xf32>
    %153 = vector.multi_reduction <add>, %152, %cst_56 [0] : vector<8x4xf32> to vector<4xf32>
    %154 = vector.shape_cast %153 : vector<4xf32> to vector<1x4xf32>
    %c0_57 = arith.constant 0 : index
    %c0_58 = arith.constant 0 : index
    %155 = vector.load %arg8[%c0_57, %c0_58] : memref<8x4xf32, #tpu.memory_space<vmem>>, vector<8x4xf32>
    %156 = vector.broadcast %146 : vector<8x1xf32> to vector<8x4xf32>
    %157 = vector.broadcast %154 : vector<1x4xf32> to vector<8x4xf32>
    %158 = arith.mulf %156, %157 : vector<8x4xf32>
    %159 = arith.addf %155, %158 : vector<8x4xf32>
    %c0_59 = arith.constant 0 : index
    %c0_60 = arith.constant 0 : index
    %160 = vector.load %arg8[%c0_59, %c0_60] : memref<8x4xf32, #tpu.memory_space<vmem>>, vector<8x4xf32>
    tpu.vector_store %arg8[%c0_59, %c0_60], %159 {strides = array<i32>} : memref<8x4xf32, #tpu.memory_space<vmem>>, vector<8x4xf32>,
    %cst_61 = arith.constant 0.000000e+00 : f32
    %161 = vector.shape_cast %146 : vector<8x1xf32> to vector<8x1xf32>
    %162 = vector.broadcast %161 : vector<8x1xf32> to vector<8x8xf32>
    %163 = vector.broadcast %cst_61 : f32 to vector<8x8xf32>
    %164 = arith.select %7, %162, %163 : vector<8x8xi1>, vector<8x8xf32>
    %cst_62 = arith.constant dense<0.000000e+00> : vector<8xf32>
    %165 = vector.multi_reduction <add>, %164, %cst_62 [0] : vector<8x8xf32> to vector<8xf32>
    %166 = vector.shape_cast %165 : vector<8xf32> to vector<1x8xf32>
    %c7_i32 = arith.constant 7 : i32
    %167 = vector.broadcast %166 : vector<1x8xf32> to vector<8x8xf32>
    %168 = arith.addf %0, %167 : vector<8x8xf32>
    %cst_63 = arith.constant dense<0x7F800000> : vector<8xf32>
    %169 = vector.multi_reduction <minimumf>, %168, %cst_63 [1] : vector<8x8xf32> to vector<8xf32>
    %170 = vector.shape_cast %169 : vector<8xf32> to vector<8x1xf32>
    %171 = vector.broadcast %c7_i32 : i32 to vector<8x1xi32>
    %172 = arith.cmpi eq, %3, %171 : vector<8x1xi32>
    %cst_64 = arith.constant 0.000000e+00 : f32
    %173 = vector.shape_cast %172 : vector<8x1xi1> to vector<8x1xi1>
    %174 = vector.broadcast %173 : vector<8x1xi1> to vector<8x4xi1>
    %175 = vector.broadcast %cst_64 : f32 to vector<8x4xf32>
    %176 = arith.select %174, %1, %175 : vector<8x4xi1>, vector<8x4xf32>
    %cst_65 = arith.constant dense<0.000000e+00> : vector<4xf32>
    %177 = vector.multi_reduction <add>, %176, %cst_65 [0] : vector<8x4xf32> to vector<4xf32>
    %178 = vector.shape_cast %177 : vector<4xf32> to vector<1x4xf32>
    %c0_66 = arith.constant 0 : index
    %c0_67 = arith.constant 0 : index
    %179 = vector.load %arg8[%c0_66, %c0_67] : memref<8x4xf32, #tpu.memory_space<vmem>>, vector<8x4xf32>
    %180 = vector.broadcast %170 : vector<8x1xf32> to vector<8x4xf32>
    %181 = vector.broadcast %178 : vector<1x4xf32> to vector<8x4xf32>
    %182 = arith.mulf %180, %181 : vector<8x4xf32>
    %183 = arith.addf %179, %182 : vector<8x4xf32>
    %c0_68 = arith.constant 0 : index
    %c0_69 = arith.constant 0 : index
    %184 = vector.load %arg8[%c0_68, %c0_69] : memref<8x4xf32, #tpu.memory_space<vmem>>, vector<8x4xf32>
    tpu.vector_store %arg8[%c0_68, %c0_69], %183 {strides = array<i32>} : memref<8x4xf32, #tpu.memory_space<vmem>>, vector<8x4xf32>,
    %cst_70 = arith.constant 0.000000e+00 : f32
    %185 = vector.shape_cast %170 : vector<8x1xf32> to vector<8x1xf32>
    %186 = vector.broadcast %185 : vector<8x1xf32> to vector<8x8xf32>
    %187 = vector.broadcast %cst_70 : f32 to vector<8x8xf32>
    %188 = arith.select %7, %186, %187 : vector<8x8xi1>, vector<8x8xf32>
    %cst_71 = arith.constant dense<0.000000e+00> : vector<8xf32>
    %189 = vector.multi_reduction <add>, %188, %cst_71 [0] : vector<8x8xf32> to vector<8xf32>
    %190 = vector.shape_cast %189 : vector<8xf32> to vector<1x8xf32>
    %c7_i32_72 = arith.constant 7 : i32
    %cst_73 = arith.constant 0.000000e+00 : f32
    %191 = vector.shape_cast %190 : vector<1x8xf32> to vector<1x8xf32>
    %192 = vector.broadcast %191 : vector<1x8xf32> to vector<8x8xf32>
    %193 = vector.broadcast %cst_73 : f32 to vector<8x8xf32>
    %194 = arith.select %7, %192, %193 : vector<8x8xi1>, vector<8x8xf32>
    %cst_74 = arith.constant dense<0.000000e+00> : vector<8xf32>
    %195 = vector.multi_reduction <add>, %194, %cst_74 [1] : vector<8x8xf32> to vector<8xf32>
    %196 = vector.shape_cast %195 : vector<8xf32> to vector<8x1xf32>
    %197 = vector.broadcast %190 : vector<1x8xf32> to vector<8x8xf32>
    %198 = arith.addf %0, %197 : vector<8x8xf32>
    %199 = vector.broadcast %196 : vector<8x1xf32> to vector<8x8xf32>
    %200 = arith.cmpf olt, %198, %199 : vector<8x8xf32>
    %cst_75 = arith.constant 1.000000e+00 : f32
    %cst_76 = arith.constant 0.000000e+00 : f32
    %201 = vector.broadcast %cst_75 : f32 to vector<8x8xf32>
    %202 = vector.broadcast %cst_76 : f32 to vector<8x8xf32>
    %203 = arith.select %200, %201, %202 : vector<8x8xi1>, vector<8x8xf32>
    %cst_77 = arith.constant dense<0xFF800000> : vector<8xf32>
    %204 = vector.multi_reduction <maximumf>, %203, %cst_77 [1] : vector<8x8xf32> to vector<8xf32>
    %205 = vector.shape_cast %204 : vector<8xf32> to vector<8x1xf32>
    %cst_78 = arith.constant dense<0xFF800000> : vector<1xf32>
    %206 = vector.multi_reduction <maximumf>, %205, %cst_78 [0] : vector<8x1xf32> to vector<1xf32>
    %207 = vector.shape_cast %206 : vector<1xf32> to vector<1x1xf32>
    %cst_79 = arith.constant 5.000000e-01 : f32
    %208 = vector.broadcast %cst_79 : f32 to vector<1x1xf32>
    %209 = arith.cmpf ogt, %207, %208 : vector<1x1xf32>
    %210 = arith.extui %209 : vector<1x1xi1> to vector<1x1xi32>
    %c0_80 = arith.constant 0 : index
    %c0_81 = arith.constant 0 : index
    %211 = vector.load %arg7[%c0_80, %c0_81] : memref<1x1xi32, #tpu.memory_space<vmem>>, vector<1x1xi32>
    tpu.vector_store %arg7[%c0_80, %c0_81], %210 {strides = array<i32>} : memref<1x1xi32, #tpu.memory_space<vmem>>, vector<1x1xi32>,
    %c0_82 = arith.constant 0 : index
    %c0_83 = arith.constant 0 : index
    %212 = vector.load %arg2[%c0_82, %c0_83] : memref<8x16xf32, #tpu.memory_space<vmem>>, vector<8x16xf32>
    %c0_84 = arith.constant 0 : index
    %c0_85 = arith.constant 0 : index
    %213 = vector.load %arg3[%c0_84, %c0_85] : memref<16x4xf32, #tpu.memory_space<vmem>>, vector<16x4xf32>
    %cst_86 = arith.constant dense<0.000000e+00> : vector<8x4xf32>
    %214 = tpu.matmul %212, %213, %cst_86 {dimension_numbers = #tpu.dot_dimension_numbers<[1], [0], [0], [1], [0, 0, 1, 1], [], []>} : vector<8x16xf32>, vector<16x4xf32>, vector<8x4xf32> -> vector<8x4xf32>
    %c0_87 = arith.constant 0 : index
    %c0_88 = arith.constant 0 : index
    %215 = vector.load %arg8[%c0_87, %c0_88] : memref<8x4xf32, #tpu.memory_space<vmem>>, vector<8x4xf32>
    %216 = arith.addf %214, %215 : vector<8x4xf32>
    %c0_89 = arith.constant 0 : index
    %c0_90 = arith.constant 0 : index
    %217 = vector.load %arg5[%c0_89, %c0_90] : memref<1x4xf32, #tpu.memory_space<vmem>>, vector<1x4xf32>
    %218 = vector.broadcast %217 : vector<1x4xf32> to vector<8x4xf32>
    %219 = arith.addf %216, %218 : vector<8x4xf32>
    %c0_91 = arith.constant 0 : index
    %c0_92 = arith.constant 0 : index
    %220 = vector.load %arg6[%c0_91, %c0_92] : memref<8x4xf32, #tpu.memory_space<vmem>>, vector<8x4xf32>
    tpu.vector_store %arg6[%c0_91, %c0_92], %219 {strides = array<i32>} : memref<8x4xf32, #tpu.memory_space<vmem>>, vector<8x4xf32>,
    return
  }
}

</mosaic_0001>

<llo_original>
// kernel: tpu_custom_call.1
$region0: #{tpu_custom_call.1}
  #allocation0 [shape = 'u32[]', space=smem, size = 0x4, offset = 0x4, fixed_abs, tag = 'smem constant byte address 0x4 - core index']
  #allocation1 [shape = 'u32[72,128]{1,0:T(1,128)}', space=vmem, size = 0x9000, scoped, tag = 'internal scratch']
  #allocation2 [shape = 'f32[8,4]{1,0:T(8,128)}', space=vmem, size = 0x1000, scoped, tag = 'scratch operand']
  #allocation3 [shape = 's32[1]{0:T(128)S(6)}', space=smem, size = 0x200, scoped, tag = 'scoped memory for tpu_custom_call.1']
  %s0 = inlined_call_operand.<no memory space> [shape: s32[1], index: 0, kind: input, shape index: {}]
  %s1 = inlined_call_operand.vmem [shape: f32[8,8], index: 1, kind: input, shape index: {}]
  %s2 = inlined_call_operand.vmem [shape: f32[8,16], index: 2, kind: input, shape index: {}]
  %s3 = inlined_call_operand.vmem [shape: f32[16,4], index: 3, kind: input, shape index: {}]
  %s4 = inlined_call_operand.vmem [shape: f32[8,4], index: 4, kind: input, shape index: {}]
  %s5 = inlined_call_operand.vmem [shape: f32[1,4], index: 5, kind: input, shape index: {}]
  %s6 = inlined_call_operand.vmem [shape: f32[8,4], index: 6, kind: output, shape index: {0}]
  %s7 = inlined_call_operand.hbm [shape: s32[1,1], index: 7, kind: output, shape index: {1}]
  %8 = xla_tuple %s6, %s7
  %s9 = sld [smem:[#allocation0]]
  $region42: #{tpu_custom_call.1} parent=0
    _
  %s11 = ssub.s32 1, %s9
  %s12 = scalar_select 0, %s11, %s9
  %13 = sst [smem:[#allocation3]] %s0
  $region1: #{tpu_custom_call.1} parent=0
    #allocation4 [shape = 'u8[512]{0}', space=vmem, size = 0x400, scoped, tag = 'output window, operand 1, single buffered']
    #allocation5 [shape = 's32[1]{0}', space=sflag, size = 0x4, scoped, tag = 'scoped memory for tpu_custom_call.1']
    %14 = vsyncpa [#allocation5], 0
    // Predicated region
    $region2: #{tpu_custom_call.1} parent=1 // pred_check
      _
    $region3: #{tpu_custom_call.1} parent=1 // pred_check_branch
      %16 = sbr.rel (0) target = $region5
    $region4: #{tpu_custom_call.1} parent=1 // pred_region
      _
    $region5: #{tpu_custom_call.1} parent=1 // pred_fallthru
      _
    // Predicated region
    $region6: #{tpu_custom_call.1} parent=1 // pred_check
      _
    $region7: #{tpu_custom_call.1} parent=1 // pred_check_branch
      %18 = sbr.rel (0) target = $region9
    $region8: #{tpu_custom_call.1} parent=1 // pred_region
      _
    $region9: #{tpu_custom_call.1} parent=1 // pred_fallthru
      _
    // Predicated region
    $region10: #{tpu_custom_call.1} parent=1 // pred_check
      _
    $region11: #{tpu_custom_call.1} parent=1 // pred_check_branch
      %20 = sbr.rel (0) target = $region13
    $region12: #{tpu_custom_call.1} parent=1 // pred_region
      _
    $region13: #{tpu_custom_call.1} parent=1 // pred_fallthru
      _
    // Predicated region
    $region14: #{tpu_custom_call.1} parent=1 // pred_check
      _
    $region15: #{tpu_custom_call.1} parent=1 // pred_check_branch
      %22 = sbr.rel (0) target = $region17
    $region16: #{tpu_custom_call.1} parent=1 // pred_region
      _
    $region17: #{tpu_custom_call.1} parent=1 // pred_fallthru
      _
    // Predicated region
    $region18: #{tpu_custom_call.1} parent=1 // pred_check
      _
    $region19: #{tpu_custom_call.1} parent=1 // pred_check_branch
      %24 = sbr.rel (0) target = $region21
    $region20: #{tpu_custom_call.1} parent=1 // pred_region
      _
    $region21: #{tpu_custom_call.1} parent=1 // pred_fallthru
      _
    // Predicated region
    $region22: #{tpu_custom_call.1} parent=1 // pred_check
      _
    $region23: #{tpu_custom_call.1} parent=1 // pred_check_branch
      %26 = sbr.rel (0) target = $region25
    $region24: #{tpu_custom_call.1} parent=1 // pred_region
      _
    $region25: #{tpu_custom_call.1} parent=1 // pred_fallthru
      _
    %v27 = vld [vmem:[%s1] sm:$0xff]
    %v28 = vld [vmem:[%s4] sm:$0xff]
    %s29 = sld [smem:[#allocation3]]
    %v30 = vlaneseq
    %v31 = vshrl.u32 %v30, 7
    %v32 = vlaneseq
    %v33 = vand.u32 %v32, 127
    %vm34 = vcmp.eq.s32.totalorder %v31, %v33
    %v35 = vstv %s29
    %vm36 = vcmp.eq.s32.totalorder %v33, %v35
    %v37 = vsel %vm36, 0.0, inf
    %vm38 = vcmp.eq.s32.totalorder %v31, %v35
    %v39 = vsel %vm38, 0.0, inf
    %v40 = vperm.slane %v28, 0
    %v41 = vmul.f32 %v39, %v40
    %vm42 = vcmask 31744
    %43 = vst.msk [vmem:[#allocation2] sm:$0xff] %vm42, %v41
    %v44 = vadd.f32 %v27, %v37
    %vm45 = vcmask 64512
    %v46 = vsel %vm45, %v44, inf
    %47 = vmin.xlane.f32.xlu0 %v46
    %v48 = vpop.xlane.xlu0 %47
    %vm49 = vcmp.eq.s32.totalorder %v31, 1
    %v50 = vsel %vm49, 1, 0
    %vm51 = vcmp.eq.s32.totalorder %v50, 1
    %v52 = vsel %vm51, %v28, 0.0
    %v53 = vsel %vm42, %v52, 0.0
    %v54 = vrot.slane %v53, 4
    %v55 = vadd.f32 %v53, %v54
    %v56 = vrot.slane %v55, 2
    %v57 = vadd.f32 %v55, %v56
    %v58 = vrot.slane %v57, 1
    %v59 = vadd.f32 %v57, %v58
    %v60 = vld [vmem:[#allocation2] sm:$0xff]
    %v61 = vmul.f32 %v48, %v59
    %v62 = vadd.f32 %v60, %v61
    %63 = vst.msk [vmem:[#allocation2] sm:$0xff] %vm42, %v62
    %v64 = vsel %vm34, %v48, 0.0
    %v65 = vsel %vm45, %v64, 0.0
    %v66 = vrot.slane %v65, 4
    %v67 = vadd.f32 %v65, %v66
    %v68 = vrot.slane %v67, 2
    %v69 = vadd.f32 %v67, %v68
    %v70 = vrot.slane %v69, 1
    %v71 = vadd.f32 %v69, %v70
    %v72 = vadd.f32 %v27, %v71
    %v73 = vsel %vm45, %v72, inf
    %74 = vmin.xlane.f32.xlu0 %v73
    %v75 = vpop.xlane.xlu0 %74
    %vm76 = vcmp.eq.s32.totalorder %v31, 2
    %v77 = vsel %vm76, 1, 0
    %vm78 = vcmp.eq.s32.totalorder %v77, 1
    %v79 = vsel %vm78, %v28, 0.0
    %v80 = vsel %vm42, %v79, 0.0
    %v81 = vrot.slane %v80, 4
    %v82 = vadd.f32 %v80, %v81
    %v83 = vrot.slane %v82, 2
    %v84 = vadd.f32 %v82, %v83
    %v85 = vrot.slane %v84, 1
    %v86 = vadd.f32 %v84, %v85
    %v87 = vld [vmem:[#allocation2] sm:$0xff]
    %v88 = vmul.f32 %v75, %v86
    %v89 = vadd.f32 %v87, %v88
    %90 = vst.msk [vmem:[#allocation2] sm:$0xff] %vm42, %v89
    %v91 = vsel %vm34, %v75, 0.0
    %v92 = vsel %vm45, %v91, 0.0
    %v93 = vrot.slane %v92, 4
    %v94 = vadd.f32 %v92, %v93
    %v95 = vrot.slane %v94, 2
    %v96 = vadd.f32 %v94, %v95
    %v97 = vrot.slane %v96, 1
    %v98 = vadd.f32 %v96, %v97
    %v99 = vadd.f32 %v27, %v98
    %v100 = vsel %vm45, %v99, inf
    %101 = vmin.xlane.f32.xlu0 %v100
    %v102 = vpop.xlane.xlu0 %101
    %vm103 = vcmp.eq.s32.totalorder %v31, 3
    %v104 = vsel %vm103, 1, 0
    %vm105 = vcmp.eq.s32.totalorder %v104, 1
    %v106 = vsel %vm105, %v28, 0.0
    %v107 = vsel %vm42, %v106, 0.0
    %v108 = vrot.slane %v107, 4
    %v109 = vadd.f32 %v107, %v108
    %v110 = vrot.slane %v109, 2
    %v111 = vadd.f32 %v109, %v110
    %v112 = vrot.slane %v111, 1
    %v113 = vadd.f32 %v111, %v112
    %v114 = vld [vmem:[#allocation2] sm:$0xff]
    %v115 = vmul.f32 %v102, %v113
    %v116 = vadd.f32 %v114, %v115
    %117 = vst.msk [vmem:[#allocation2] sm:$0xff] %vm42, %v116
    %v118 = vsel %vm34, %v102, 0.0
    %v119 = vsel %vm45, %v118, 0.0
    %v120 = vrot.slane %v119, 4
    %v121 = vadd.f32 %v119, %v120
    %v122 = vrot.slane %v121, 2
    %v123 = vadd.f32 %v121, %v122
    %v124 = vrot.slane %v123, 1
    %v125 = vadd.f32 %v123, %v124
    %v126 = vadd.f32 %v27, %v125
    %v127 = vsel %vm45, %v126, inf
    %128 = vmin.xlane.f32.xlu0 %v127
    %v129 = vpop.xlane.xlu0 %128
    %vm130 = vcmp.eq.s32.totalorder %v31, 4
    %v131 = vsel %vm130, 1, 0
    %vm132 = vcmp.eq.s32.totalorder %v131, 1
    %v133 = vsel %vm132, %v28, 0.0
    %v134 = vsel %vm42, %v133, 0.0
    %v135 = vrot.slane %v134, 4
    %v136 = vadd.f32 %v134, %v135
    %v137 = vrot.slane %v136, 2
    %v138 = vadd.f32 %v136, %v137
    %v139 = vrot.slane %v138, 1
    %v140 = vadd.f32 %v138, %v139
    %v141 = vld [vmem:[#allocation2] sm:$0xff]
    %v142 = vmul.f32 %v129, %v140
    %v143 = vadd.f32 %v141, %v142
    %144 = vst.msk [vmem:[#allocation2] sm:$0xff] %vm42, %v143
    %v145 = vsel %vm34, %v129, 0.0
    %v146 = vsel %vm45, %v145, 0.0
    %v147 = vrot.slane %v146, 4
    %v148 = vadd.f32 %v146, %v147
    %v149 = vrot.slane %v148, 2
    %v150 = vadd.f32 %v148, %v149
    %v151 = vrot.slane %v150, 1
    %v152 = vadd.f32 %v150, %v151
    %v153 = vadd.f32 %v27, %v152
    %v154 = vsel %vm45, %v153, inf
    %155 = vmin.xlane.f32.xlu0 %v154
    %v156 = vpop.xlane.xlu0 %155
    %vm157 = vcmp.eq.s32.totalorder %v31, 5
    %v158 = vsel %vm157, 1, 0
    %vm159 = vcmp.eq.s32.totalorder %v158, 1
    %v160 = vsel %vm159, %v28, 0.0
    %v161 = vsel %vm42, %v160, 0.0
    %v162 = vrot.slane %v161, 4
    %v163 = vadd.f32 %v161, %v162
    %v164 = vrot.slane %v163, 2
    %v165 = vadd.f32 %v163, %v164
    %v166 = vrot.slane %v165, 1
    %v167 = vadd.f32 %v165, %v166
    %v168 = vld [vmem:[#allocation2] sm:$0xff]
    %v169 = vmul.f32 %v156, %v167
    %v170 = vadd.f32 %v168, %v169
    %171 = vst.msk [vmem:[#allocation2] sm:$0xff] %vm42, %v170
    %v172 = vsel %vm34, %v156, 0.0
    %v173 = vsel %vm45, %v172, 0.0
    %v174 = vrot.slane %v173, 4
    %v175 = vadd.f32 %v173, %v174
    %v176 = vrot.slane %v175, 2
    %v177 = vadd.f32 %v175, %v176
    %v178 = vrot.slane %v177, 1
    %v179 = vadd.f32 %v177, %v178
    %v180 = vadd.f32 %v27, %v179
    %v181 = vsel %vm45, %v180, inf
    %182 = vmin.xlane.f32.xlu0 %v181
    %v183 = vpop.xlane.xlu0 %182
    %vm184 = vcmp.eq.s32.totalorder %v31, 6
    %v185 = vsel %vm184, 1, 0
    %vm186 = vcmp.eq.s32.totalorder %v185, 1
    %v187 = vsel %vm186, %v28, 0.0
    %v188 = vsel %vm42, %v187, 0.0
    %v189 = vrot.slane %v188, 4
    %v190 = vadd.f32 %v188, %v189
    %v191 = vrot.slane %v190, 2
    %v192 = vadd.f32 %v190, %v191
    %v193 = vrot.slane %v192, 1
    %v194 = vadd.f32 %v192, %v193
    %v195 = vld [vmem:[#allocation2] sm:$0xff]
    %v196 = vmul.f32 %v183, %v194
    %v197 = vadd.f32 %v195, %v196
    %198 = vst.msk [vmem:[#allocation2] sm:$0xff] %vm42, %v197
    %v199 = vsel %vm34, %v183, 0.0
    %v200 = vsel %vm45, %v199, 0.0
    %v201 = vrot.slane %v200, 4
    %v202 = vadd.f32 %v200, %v201
    %v203 = vrot.slane %v202, 2
    %v204 = vadd.f32 %v202, %v203
    %v205 = vrot.slane %v204, 1
    %v206 = vadd.f32 %v204, %v205
    %v207 = vadd.f32 %v27, %v206
    %v208 = vsel %vm45, %v207, inf
    %209 = vmin.xlane.f32.xlu0 %v208
    %v210 = vpop.xlane.xlu0 %209
    %vm211 = vcmp.eq.s32.totalorder %v31, 7
    %v212 = vsel %vm211, 1, 0
    %vm213 = vcmp.eq.s32.totalorder %v212, 1
    %v214 = vsel %vm213, %v28, 0.0
    %v215 = vsel %vm42, %v214, 0.0
    %v216 = vrot.slane %v215, 4
    %v217 = vadd.f32 %v215, %v216
    %v218 = vrot.slane %v217, 2
    %v219 = vadd.f32 %v217, %v218
    %v220 = vrot.slane %v219, 1
    %v221 = vadd.f32 %v219, %v220
    %v222 = vld [vmem:[#allocation2] sm:$0xff]
    %v223 = vmul.f32 %v210, %v221
    %v224 = vadd.f32 %v222, %v223
    %225 = vst.msk [vmem:[#allocation2] sm:$0xff] %vm42, %v224
    %v226 = vsel %vm34, %v210, 0.0
    %v227 = vsel %vm45, %v226, 0.0
    %v228 = vrot.slane %v227, 4
    %v229 = vadd.f32 %v227, %v228
    %v230 = vrot.slane %v229, 2
    %v231 = vadd.f32 %v229, %v230
    %v232 = vrot.slane %v231, 1
    %v233 = vadd.f32 %v231, %v232
    %v234 = vsel %vm34, %v233, 0.0
    %v235 = vsel %vm45, %v234, 0.0
    %236 = vadd.xlane.f32.xlu0 %v235
    %v237 = vpop.xlane.xlu0 %236
    %v238 = vadd.f32 %v27, %v233
    %vm239 = vcmp.lt.f32.partialorder %v238, %v237
    %v240 = vsel %vm239, 1.0, 0.0
    %v241 = vsel %vm45, %v240, -inf
    %242 = vmax.xlane.f32.xlu0 %v241
    %v243 = vpop.xlane.xlu0 %242
    %v244 = vrot.slane %v243, 4
    %v245 = vmax.f32 %v243, %v244
    %v246 = vrot.slane %v245, 2
    %v247 = vmax.f32 %v245, %v246
    %v248 = vrot.slane %v247, 1
    %v249 = vmax.f32 %v247, %v248
    %vm250 = vcmp.gt.f32.partialorder %v249, 0.5
    %v251 = vsel %vm250, 1, 0
    %vm252 = vcmask 0
    %253 = vst.msk [vmem:[#allocation4] sm:$0x1] %vm252, %v251
    %v254 = vld [vmem:[%s2] sm:$0xff]
    %v255 = vld [vmem:[%s3] sm:$0xff]
    %v256 = vld [vmem:[%s3 + $0x8] sm:$0xff]
    %v257 = vld [vmem:[#allocation2] sm:$0xff]
    %vm258 = vcmask 130048
    %v260 = vsel %vm258, %v254, 0
    %262 = vmatpush.msra.mxu0 0.0
    %263 = vmatpush.msra.mxu0 0.0
    %264 = vmatpush.msra.mxu0 0.0
    %265 = vmatpush.msra.mxu0 0.0
    %266 = vmatpush.msra.mxu0 0.0
    %267 = vmatpush.msra.mxu0 0.0
    %268 = vmatpush.msra.mxu0 0.0
    %269 = vmatpush.msra.mxu0 0.0
    %270 = vmatpush.msra.mxu0 0.0
    %271 = vmatpush.msra.mxu0 0.0
    %272 = vmatpush.msra.mxu0 0.0
    %273 = vmatpush.msra.mxu0 0.0
    %274 = vmatpush.msra.mxu0 0.0
    %275 = vmatpush.msra.mxu0 0.0
    %276 = vmatpush.msra.mxu0 %v256
    %277 = vmatpush.msra.mxu0 %v255
    %278 = vmatmul.f32.gmra.mxu0 %v260
    %v279 = vpop.f32.mrf.mxu0
    %v280 = vadd.f32 %v257, %v279
    %281 = vdwg.mxu0
    %v282 = vld [vmem:[%s5] sm:$0x1]
    %v284 = vperm.slane %v282, 0
    %v286 = vadd.f32 %v280, %v284
    %287 = vst.msk [vmem:[%s6] sm:$0xff] %vm42, %v286
    // Predicated region
    $region26: #{tpu_custom_call.1} parent=1 // pred_check
      _
    $region27: #{tpu_custom_call.1} parent=1 // pred_check_branch
      %289 = sbr.rel (0) target = $region29
    $region28: #{tpu_custom_call.1} parent=1 // pred_region
      _
    $region29: #{tpu_custom_call.1} parent=1 // pred_fallthru
      _
    // Predicated region
    $region30: #{tpu_custom_call.1} parent=1 // pred_check
      _
    $region31: #{tpu_custom_call.1} parent=1 // pred_check_branch
      %291 = sbr.rel (0) target = $region33
    $region32: #{tpu_custom_call.1} parent=1 // pred_region
      %293 = vsyncadd [#allocation5], 0
      %s295 = sshll.u32 [#allocation4], 4
      %s296 = int_to_ptr.vmem [resolvable:$true] %s295
      %s297 = sshll.u32 %s7, 4
      %s298 = int_to_ptr.hbm [resolvable:$true] %s297
      %300 = dma.vmem_to_hbm [thread:$0]  %s296, 16, %s298, [#allocation5]
    $region33: #{tpu_custom_call.1} parent=1 // pred_fallthru
      _
    // Predicated region
    $region34: #{tpu_custom_call.1} parent=1 // pred_check
      _
    $region35: #{tpu_custom_call.1} parent=1 // pred_check_branch
      %302 = sbr.rel (0) target = $region37
    $region36: #{tpu_custom_call.1} parent=1 // pred_region
      _
    $region37: #{tpu_custom_call.1} parent=1 // pred_fallthru
      _
    // Predicated region
    $region38: #{tpu_custom_call.1} parent=1 // pred_check
      _
    $region39: #{tpu_custom_call.1} parent=1 // pred_check_branch
      %304 = sbr.rel (0) target = $region41
    $region40: #{tpu_custom_call.1} parent=1 // pred_region
      %306 = dma.done [#allocation5], 16
    $region41: #{tpu_custom_call.1} parent=1 // pred_fallthru
      _
    %307 = vsyncpa [#allocation5], 1

</llo_original>
